<compile_context>
chip_gen: v6e
topology: v6e:2x2x1
jax: 0.10.0
libtpu: 0.0.40
codegen_flags: <defaults>
</compile_context>

<pallas_src>
import numpy as np
import jax
import jax.numpy as jnp
from jax.experimental import pallas as pl
from jax.experimental.pallas import tpu as pltpu

# ---- module hyper-parameters (synthetic, small) -----------------------------
INPUT_SIZE = 32
HIDDEN_SIZE = 16
OUTPUT_SIZE = 8
BATCH = 8

# "gene group" masking config (synthetic, deterministic)
TEST_BEHAVIOR = True
WEIGHTS_TO_TEST = [0, 3]          # hidden units forced to zero weights & bias


def _ru(n: int, m: int) -> int:
    return ((n + m - 1) // m) * m


# Packed parameter buffer (feature-major compute layout), one resident VMEM tile:
#   rows [R_W1 : R_W1+HID)  cols [0:IN)   = fc1.weight   (HID, IN)
#   rows [R_W1 : R_W1+HID)  col  C_B1     = fc1.bias     (HID, 1) column
#   rows [R_W2 : R_W2+OUT)  cols [0:HID)  = fc2.weight   (OUT, HID)
#   rows [R_W2 : R_W2+OUT)  col  C_B2     = fc2.bias     (OUT, 1) column
R_W1 = 0
C_B1 = INPUT_SIZE
R_W2 = _ru(HIDDEN_SIZE, 8)
C_B2 = HIDDEN_SIZE
P_ROWS = R_W2 + _ru(OUTPUT_SIZE, 8)   # 24
P_COLS = 128                          # lane-aligned; holds IN(32)+bias col, HID(16)+bias col


def _make_masks():
    """Recreate make_mask(): weight_mask (hidden, input), bias_mask (hidden,)."""
    gene_group_indicies = [
        [(i * 2 + k) % INPUT_SIZE for k in range(4)] for i in range(HIDDEN_SIZE)
    ]
    wmask = np.zeros((HIDDEN_SIZE, INPUT_SIZE), dtype=np.float32)
    for i, gene_group in enumerate(gene_group_indicies):
        if TEST_BEHAVIOR and i in WEIGHTS_TO_TEST:
            gene_group = []
        wmask[i, gene_group] = 1.0
    bmask = np.ones((HIDDEN_SIZE,), dtype=np.float32)
    bmask[WEIGHTS_TO_TEST] = 0.0
    return jnp.asarray(wmask), jnp.asarray(bmask)


def _init_params(key):
    """Deterministic init (stands in for get_starting_seed + default init) + masking."""
    k1, k2, k3, k4 = jax.random.split(key, 4)
    w1 = jax.random.normal(k1, (HIDDEN_SIZE, INPUT_SIZE), jnp.float32) * 0.1  # torch layout
    b1 = jax.random.normal(k2, (HIDDEN_SIZE,), jnp.float32) * 0.1
    w2 = jax.random.normal(k3, (OUTPUT_SIZE, HIDDEN_SIZE), jnp.float32) * 0.1
    b2 = jax.random.normal(k4, (OUTPUT_SIZE,), jnp.float32) * 0.1
    wmask, bmask = _make_masks()
    w1 = w1 * wmask                 # load_starting_seed() / mask() semantics: init-time
    b1 = b1 * bmask
    return w1, b1, w2, b2


def pack_params(w1, b1, w2, b2):
    """One-time (init-side) layout work: pack all params into one VMEM-resident buffer."""
    buf = jnp.zeros((P_ROWS, P_COLS), jnp.float32)
    buf = buf.at[R_W1:R_W1 + HIDDEN_SIZE, 0:INPUT_SIZE].set(w1)
    buf = buf.at[R_W1:R_W1 + HIDDEN_SIZE, C_B1].set(b1)
    buf = buf.at[R_W2:R_W2 + OUTPUT_SIZE, 0:HIDDEN_SIZE].set(w2)
    buf = buf.at[R_W2:R_W2 + OUTPUT_SIZE, C_B2].set(b2)
    return buf


# ---- Pallas kernel: fused fc1 -> relu -> fc2 -> sigmoid (feature-major) -----
def mlp_kernel(xT_ref, p_ref, oT_ref):
    # xT: (IN, TB) bf16, batch on the 128-lane axis; params resident across the grid.
    xT = xT_ref[...].astype(jnp.float32)                          # upcast on VPU
    w1 = p_ref[R_W1:R_W1 + HIDDEN_SIZE, 0:INPUT_SIZE]             # (HID, IN)
    b1 = p_ref[R_W1:R_W1 + HIDDEN_SIZE, C_B1:C_B1 + 1]            # (HID, 1)
    w2 = p_ref[R_W2:R_W2 + OUTPUT_SIZE, 0:HIDDEN_SIZE]            # (OUT, HID)
    b2 = p_ref[R_W2:R_W2 + OUTPUT_SIZE, C_B2:C_B2 + 1]            # (OUT, 1)

    h = jnp.dot(w1, xT, preferred_element_type=jnp.float32) + b1  # (HID, TB)  MXU
    h = jnp.maximum(h, 0.0)                                       # ReLU       VPU
    o = jnp.dot(w2, h, preferred_element_type=jnp.float32) + b2   # (OUT, TB)  MXU
    oT_ref[...] = jax.nn.sigmoid(o).astype(oT_ref.dtype)          # sigmoid -> EUP, lane-dense store


def nn_zerow_forward(x, packed_params, *, block_b=4096):
    """Forward pass. x: (B, INPUT_SIZE); `packed_params` built once via pack_params()."""
    B = x.shape[0]
    block_b = max(128, _ru(int(block_b), 128))        # lane-aligned caller tile

    if B > 256:
        # Large batch: lane-aligned tile, capped so the grid has >=2 steps (v7x megacore).
        TB = min(_ru(pl.cdiv(B, 2), 128), block_b)
        B_pad = _ru(B, TB)
    else:
        # Tiny batch: single step, block == full array dims (allowed by the (8,128) rule).
        TB = B
        B_pad = B
    grid = (B_pad // TB,)

    # Wrapper-side layout plumbing: feature-major + bf16 streaming of the dominant operand.
    xT = x.T.astype(jnp.bfloat16)                     # (IN, B)
    if B_pad != B:
        xT = jnp.pad(xT, ((0, 0), (0, B_pad - B)))    # zero tail -> finite padded math

    # Explicit VMEM budget (double-buffered xT + outT tiles + resident params), safe on
    # v5e/v6e (128 MiB) and v7x (64 MiB).
    tile_bytes = 2 * (INPUT_SIZE * TB * 2 + OUTPUT_SIZE * TB * 4 + P_ROWS * P_COLS * 4)
    vmem_limit = int(min(32 << 20, max(4 << 20, 2 * tile_bytes)))

    outT = pl.pallas_call(
        mlp_kernel,
        out_shape=jax.ShapeDtypeStruct((OUTPUT_SIZE, B_pad), jnp.float32),
        grid_spec=pltpu.PrefetchScalarGridSpec(
            num_scalar_prefetch=0,
            grid=grid,
            in_specs=[
                pl.BlockSpec((INPUT_SIZE, TB), lambda i: (0, i)),   # streamed x^T columns
                pl.BlockSpec((P_ROWS, P_COLS), lambda i: (0, 0)),   # resident params (1 DMA)
            ],
            out_specs=pl.BlockSpec((OUTPUT_SIZE, TB), lambda i: (0, i)),  # lane-dense out^T
        ),
        compiler_params=pltpu.CompilerParams(
            dimension_semantics=("parallel",),   # v7x: split batch grid over 2 TCs
            vmem_limit_bytes=vmem_limit,
        ),
    )(xT, packed_params)

    return outT[:, :B].T                              # back to (B, OUTPUT_SIZE)


def _reference(x, w1, b1, w2, b2):
    # Reference matches the kernel's bf16 streaming of x (upcast before the dots).
    xq = x.astype(jnp.bfloat16).astype(jnp.float32)
    return jax.nn.sigmoid(jnp.maximum(xq @ w1.T + b1, 0.0) @ w2.T + b2)


if __name__ == "__main__":
    key = jax.random.PRNGKey(0)
    kx, kp, kx2 = jax.random.split(key, 3)
    w1, b1, w2, b2 = _init_params(kp)
    packed = pack_params(w1, b1, w2, b2)          # one-time init-side layout work
    packed = jax.block_until_ready(packed)

    # Small-batch run (module's nominal shape).
    x = jax.random.normal(kx, (BATCH, INPUT_SIZE), jnp.float32)
    out = nn_zerow_forward(x, packed)
    out = jax.block_until_ready(out)
    assert out.shape == (BATCH, OUTPUT_SIZE)
    np.testing.assert_allclose(np.asarray(out), np.asarray(_reference(x, w1, b1, w2, b2)),
                               rtol=1e-5, atol=1e-5)

    # Larger batch exercises the multi-step (v7x-parallel) grid and the padded tail.
    B2 = 384
    x2 = jax.random.normal(kx2, (B2, INPUT_SIZE), jnp.float32)
    out2 = jax.block_until_ready(nn_zerow_forward(x2, packed))
    assert out2.shape == (B2, OUTPUT_SIZE)
    np.testing.assert_allclose(np.asarray(out2), np.asarray(_reference(x2, w1, b1, w2, b2)),
                               rtol=1e-5, atol=1e-5)

    print("KERNEL_OK")
</pallas_src>

<mosaic_0001>
module attributes {stable_mosaic.version = 11 : i64} {
  func.func @mlp_kernel(%arg0: i32, %arg1: memref<32x8xbf16, #tpu.memory_space<vmem>>, %arg2: memref<24x128xf32, #tpu.memory_space<vmem>>, %arg3: memref<8x8xf32, #tpu.memory_space<vmem>>) attributes {dimension_semantics = [#tpu.dimension_semantics<parallel>], iteration_bounds = array<i64: 1>, scalar_prefetch = 0 : i64, scratch_operands = 0 : i64, tpu.core_type = #tpu.core_type<tc>, window_params = [{transform_indices = @transform_0, window_bounds = array<i64: 32, 8>}, {pipeline_mode = #tpu.pipeline_mode<synchronous>, transform_indices = @transform_1, window_bounds = array<i64: 24, 128>}, {transform_indices = @transform_2, window_bounds = array<i64: 8, 8>}]} {
    %c0 = arith.constant 0 : index
    %c0_0 = arith.constant 0 : index
    %0 = vector.load %arg1[%c0, %c0_0] : memref<32x8xbf16, #tpu.memory_space<vmem>>, vector<32x8xbf16>
    %1 = arith.extf %0 : vector<32x8xbf16> to vector<32x8xf32>
    %c0_1 = arith.constant 0 : index
    %c0_2 = arith.constant 0 : index
    %2 = vector.load %arg2[%c0_1, %c0_2] : memref<24x128xf32, #tpu.memory_space<vmem>>, vector<16x32xf32>
    %c0_3 = arith.constant 0 : index
    %c32 = arith.constant 32 : index
    %3 = vector.load %arg2[%c0_3, %c32] : memref<24x128xf32, #tpu.memory_space<vmem>>, vector<16x1xf32>
    %c16 = arith.constant 16 : index
    %c0_4 = arith.constant 0 : index
    %4 = vector.load %arg2[%c16, %c0_4] : memref<24x128xf32, #tpu.memory_space<vmem>>, vector<8x16xf32>
    %c16_5 = arith.constant 16 : index
    %c16_6 = arith.constant 16 : index
    %5 = vector.load %arg2[%c16_5, %c16_6] : memref<24x128xf32, #tpu.memory_space<vmem>>, vector<8x1xf32>
    %cst = arith.constant dense<0.000000e+00> : vector<16x8xf32>
    %6 = tpu.matmul %2, %1, %cst {dimension_numbers = #tpu.dot_dimension_numbers<[1], [0], [0], [1], [0, 0, 1, 1], [], []>} : vector<16x32xf32>, vector<32x8xf32>, vector<16x8xf32> -> vector<16x8xf32>
    %7 = vector.broadcast %3 : vector<16x1xf32> to vector<16x8xf32>
    %8 = arith.addf %6, %7 : vector<16x8xf32>
    %cst_7 = arith.constant 0.000000e+00 : f32
    %9 = vector.broadcast %cst_7 : f32 to vector<16x8xf32>
    %10 = arith.maximumf %8, %9 : vector<16x8xf32>
    %cst_8 = arith.constant dense<0.000000e+00> : vector<8x8xf32>
    %11 = tpu.matmul %4, %10, %cst_8 {dimension_numbers = #tpu.dot_dimension_numbers<[1], [0], [0], [1], [0, 0, 1, 1], [], []>} : vector<8x16xf32>, vector<16x8xf32>, vector<8x8xf32> -> vector<8x8xf32>
    %12 = vector.broadcast %5 : vector<8x1xf32> to vector<8x8xf32>
    %13 = arith.addf %11, %12 : vector<8x8xf32>
    %14 = arith.negf %13 : vector<8x8xf32>
    %15 = math.exp %14 : vector<8x8xf32>
    %cst_9 = arith.constant 1.000000e+00 : f32
    %16 = vector.broadcast %cst_9 : f32 to vector<8x8xf32>
    %17 = arith.addf %16, %15 : vector<8x8xf32>
    %18 = arith.divf %16, %17 : vector<8x8xf32>
    %c0_10 = arith.constant 0 : index
    %c0_11 = arith.constant 0 : index
    %19 = vector.load %arg3[%c0_10, %c0_11] : memref<8x8xf32, #tpu.memory_space<vmem>>, vector<8x8xf32>
    tpu.vector_store %arg3[%c0_10, %c0_11], %18 {strides = array<i32>} : memref<8x8xf32, #tpu.memory_space<vmem>>, vector<8x8xf32>,
    return
  }
  func.func @transform_0(%arg0: i32) -> (i32, i32) {
    %c0_i32 = arith.constant 0 : i32
    %c0_i32_0 = arith.constant 0 : i32
    return %c0_i32, %arg0 : i32, i32
  }
  func.func @transform_1(%arg0: i32) -> (i32, i32) {
    %c0_i32 = arith.constant 0 : i32
    %c0_i32_0 = arith.constant 0 : i32
    %c0_i32_1 = arith.constant 0 : i32
    return %c0_i32, %c0_i32_0 : i32, i32
  }
  func.func @transform_2(%arg0: i32) -> (i32, i32) {
    %c0_i32 = arith.constant 0 : i32
    %c0_i32_0 = arith.constant 0 : i32
    return %c0_i32, %arg0 : i32, i32
  }
}

</mosaic_0001>

<llo_original>
// kernel: tpu_custom_call.1
$region0: #{tpu_custom_call.1}
  #allocation0 [shape = 'u32[]', space=smem, size = 0x4, offset = 0x4, fixed_abs, tag = 'smem constant byte address 0x4 - core index']
  #allocation1 [shape = 'u32[144,128]{1,0:T(1,128)}', space=vmem, size = 0x12000, scoped, tag = 'internal scratch']
  %s0 = inlined_call_operand.vmem [shape: bf16[32,8], index: 0, kind: input, shape index: {}]
  %s1 = inlined_call_operand.hbm [shape: f32[24,128], index: 1, kind: input, shape index: {}]
  %s2 = inlined_call_operand.hbm [shape: f32[8,8], index: 2, kind: output, shape index: {}]
  %s3 = sld [smem:[#allocation0]]
  $region22: #{tpu_custom_call.1} parent=0
    _
  %s5 = ssub.s32 1, %s3
  %s6 = scalar_select 0, %s5, %s3
  $region1: #{tpu_custom_call.1} parent=0
    #allocation2 [shape = 'u8[12288]{0}', space=vmem, size = 0x3000, scoped, tag = 'input window, operand 1, single buffered']
    #allocation3 [shape = 's32[1]{0}', space=sflag, size = 0x4, scoped, tag = 'scoped memory for tpu_custom_call.1']
    #allocation4 [shape = 's32[1]{0}', space=sflag, size = 0x4, scoped, tag = 'scoped memory for tpu_custom_call.1']
    #allocation5 [shape = 'u8[4096]{0}', space=vmem, size = 0x1000, scoped, tag = 'output window, operand 0, single buffered']
    %7 = vsyncpa [#allocation3], 0
    %8 = vsyncpa [#allocation4], 0
    // Predicated region
    $region2: #{tpu_custom_call.1} parent=1 // pred_check
      _
    $region3: #{tpu_custom_call.1} parent=1 // pred_check_branch
      %10 = sbr.rel (0) target = $region5
    $region4: #{tpu_custom_call.1} parent=1 // pred_region
      _
    $region5: #{tpu_custom_call.1} parent=1 // pred_fallthru
      _
    // Predicated region
    $region6: #{tpu_custom_call.1} parent=1 // pred_check
      _
    $region7: #{tpu_custom_call.1} parent=1 // pred_check_branch
      %12 = sbr.rel (0) target = $region9
    $region8: #{tpu_custom_call.1} parent=1 // pred_region
      %s14 = ssub.s32 384, 384
      %15 = vsyncadd [#allocation3], %s14
      %s16 = sshll.u32 [#allocation2], 4
      %s17 = int_to_ptr.vmem [resolvable:$true] %s16
      %22 = dma.hbm_to_vmem [thread:$0]  %s1, 384, %s17, [#allocation3], 128, 128, 8
    $region9: #{tpu_custom_call.1} parent=1 // pred_fallthru
      _
    // Predicated region
    $region10: #{tpu_custom_call.1} parent=1 // pred_check
      _
    $region11: #{tpu_custom_call.1} parent=1 // pred_check_branch
      %24 = sbr.rel (0) target = $region13
    $region12: #{tpu_custom_call.1} parent=1 // pred_region
      %25 = dma.done [#allocation3], 384
    $region13: #{tpu_custom_call.1} parent=1 // pred_fallthru
      _
    %v26 = vld [vmem:[%s0] sm:$0xf]
    %v27 = vld [vmem:[%s0 + $0x4] sm:$0xf]
    %v28 = vld [vmem:[%s0 + $0x8] sm:$0xf]
    %v29 = vld [vmem:[%s0 + $0xc] sm:$0xf]
    %v30 = vunpack.c.l.bf16 %v26
    %v31 = vunpack.c.l.bf16 %v27
    %v32 = vunpack.c.l.bf16 %v28
    %v33 = vunpack.c.l.bf16 %v29
    %v34 = vld [vmem:[#allocation2] sm:$0xff]
    %v35 = vld [vmem:[#allocation2 + $0x8] sm:$0xff]
    %v36 = vld [vmem:[#allocation2 + $0x10] sm:$0xff]
    %38 = vset.pattern.permute.xlu0 32
    %39 = vperm.xlu0 %38, %v34
    %v40 = vpop.permute.xlu0 %39
    %43 = vset.pattern.permute.xlu0 32
    %44 = vperm.xlu0 %43, %v35
    %v45 = vpop.permute.xlu0 %44
    %vm47 = vcmask 261120
    %v48 = vsel %vm47, %v34, 0
    %v50 = vsel %vm47, %v35, 0
    %52 = vmatprep.subr.mxu0 0.0
    %53 = vmatpush1.msra.mxu0 0.0
    %54 = vmatprep.subr.mxu0 0.0
    %55 = vmatpush1.msra.mxu0 0.0
    %56 = vmatprep.subr.mxu0 0.0
    %57 = vmatpush1.msra.mxu0 0.0
    %58 = vmatprep.subr.mxu0 0.0
    %59 = vmatpush1.msra.mxu0 0.0
    %60 = vmatprep.subr.mxu0 0.0
    %61 = vmatpush1.msra.mxu0 0.0
    %62 = vmatprep.subr.mxu0 0.0
    %63 = vmatpush1.msra.mxu0 0.0
    %64 = vmatprep.subr.mxu0 0.0
    %65 = vmatpush1.msra.mxu0 0.0
    %66 = vmatprep.subr.mxu0 0.0
    %67 = vmatpush1.msra.mxu0 0.0
    %68 = vmatprep.subr.mxu0 0.0
    %69 = vmatpush1.msra.mxu0 0.0
    %70 = vmatprep.subr.mxu0 0.0
    %71 = vmatpush1.msra.mxu0 0.0
    %72 = vmatprep.subr.mxu0 0.0
    %73 = vmatpush1.msra.mxu0 0.0
    %74 = vmatprep.subr.mxu0 0.0
    %75 = vmatpush1.msra.mxu0 0.0
    %76 = vmatprep.subr.mxu0 0.0
    %77 = vmatpush1.msra.mxu0 %v33
    %78 = vmatprep.subr.mxu0 0.0
    %79 = vmatpush1.msra.mxu0 %v32
    %80 = vmatprep.subr.mxu0 0.0
    %81 = vmatpush1.msra.mxu0 %v31
    %82 = vmatprep.subr.mxu0 0.0
    %83 = vmatpush1.msra.mxu0 %v30
    %84 = vmatprep.subr.mxu0 0.0
    %85 = vmatpush2.msra.mxu0 0.0
    %86 = vmatprep.subr.mxu0 0.0
    %87 = vmatpush2.msra.mxu0 0.0
    %88 = vmatprep.subr.mxu0 0.0
    %89 = vmatpush2.msra.mxu0 0.0
    %90 = vmatprep.subr.mxu0 0.0
    %91 = vmatpush2.msra.mxu0 0.0
    %92 = vmatprep.subr.mxu0 0.0
    %93 = vmatpush2.msra.mxu0 0.0
    %94 = vmatprep.subr.mxu0 0.0
    %95 = vmatpush2.msra.mxu0 0.0
    %96 = vmatprep.subr.mxu0 0.0
    %97 = vmatpush2.msra.mxu0 0.0
    %98 = vmatprep.subr.mxu0 0.0
    %99 = vmatpush2.msra.mxu0 0.0
    %100 = vmatprep.subr.mxu0 0.0
    %101 = vmatpush2.msra.mxu0 0.0
    %102 = vmatprep.subr.mxu0 0.0
    %103 = vmatpush2.msra.mxu0 0.0
    %104 = vmatprep.subr.mxu0 0.0
    %105 = vmatpush2.msra.mxu0 0.0
    %106 = vmatprep.subr.mxu0 0.0
    %107 = vmatpush2.msra.mxu0 0.0
    %108 = vmatprep.subr.mxu0 0.0
    %109 = vmatpush2.msra.mxu0 0.0
    %110 = vmatprep.subr.mxu0 0.0
    %111 = vmatpush2.msra.mxu0 0.0
    %112 = vmatprep.subr.mxu0 0.0
    %113 = vmatpush2.msra.mxu0 0.0
    %114 = vmatprep.subr.mxu0 0.0
    %115 = vmatpush2.msra.mxu0 0.0
    %116 = vmatprep.mubr.f32.mxu0 0.0
    %117 = vmatmul.mubr.f32.gmra.mxu0 %v48
    %v118 = vpop.f32.mrf.mxu0
    %v119 = vadd.f32 %v40, %v118
    %v120 = vpop.f32.mrf.mxu0
    %121 = vmatprep.mubr.f32.mxu0 0.0
    %122 = vmatmul.mubr.f32.gmra.mxu0 %v50
    %v123 = vpop.f32.mrf.mxu0
    %v124 = vadd.f32 %v45, %v123
    %v125 = vpop.f32.mrf.mxu0
    %126 = vdwg.mxu0
    %v127 = vmax.f32 %v119, 0.0
    %v128 = vmax.f32 %v124, 0.0
    %130 = vset.pattern.permute.xlu0 16
    %131 = vperm.xlu0 %130, %v36
    %v132 = vpop.permute.xlu0 %131
    %vm134 = vcmask 130048
    %v135 = vsel %vm134, %v36, 0
    %137 = vmatprep.subr.mxu0 0.0
    %138 = vmatpush1.msra.mxu0 0.0
    %139 = vmatprep.subr.mxu0 0.0
    %140 = vmatpush1.msra.mxu0 0.0
    %141 = vmatprep.subr.mxu0 0.0
    %142 = vmatpush1.msra.mxu0 0.0
    %143 = vmatprep.subr.mxu0 0.0
    %144 = vmatpush1.msra.mxu0 0.0
    %145 = vmatprep.subr.mxu0 0.0
    %146 = vmatpush1.msra.mxu0 0.0
    %147 = vmatprep.subr.mxu0 0.0
    %148 = vmatpush1.msra.mxu0 0.0
    %149 = vmatprep.subr.mxu0 0.0
    %150 = vmatpush1.msra.mxu0 0.0
    %151 = vmatprep.subr.mxu0 0.0
    %152 = vmatpush1.msra.mxu0 0.0
    %153 = vmatprep.subr.mxu0 0.0
    %154 = vmatpush1.msra.mxu0 0.0
    %155 = vmatprep.subr.mxu0 0.0
    %156 = vmatpush1.msra.mxu0 0.0
    %157 = vmatprep.subr.mxu0 0.0
    %158 = vmatpush1.msra.mxu0 0.0
    %159 = vmatprep.subr.mxu0 0.0
    %160 = vmatpush1.msra.mxu0 0.0
    %161 = vmatprep.subr.mxu0 0.0
    %162 = vmatpush1.msra.mxu0 0.0
    %163 = vmatprep.subr.mxu0 0.0
    %164 = vmatpush1.msra.mxu0 0.0
    %165 = vmatprep.subr.mxu0 0.0
    %166 = vmatpush1.msra.mxu0 %v128
    %167 = vmatprep.subr.mxu0 0.0
    %168 = vmatpush1.msra.mxu0 %v127
    %169 = vmatprep.subr.mxu0 0.0
    %170 = vmatpush2.msra.mxu0 0.0
    %171 = vmatprep.subr.mxu0 0.0
    %172 = vmatpush2.msra.mxu0 0.0
    %173 = vmatprep.subr.mxu0 0.0
    %174 = vmatpush2.msra.mxu0 0.0
    %175 = vmatprep.subr.mxu0 0.0
    %176 = vmatpush2.msra.mxu0 0.0
    %177 = vmatprep.subr.mxu0 0.0
    %178 = vmatpush2.msra.mxu0 0.0
    %179 = vmatprep.subr.mxu0 0.0
    %180 = vmatpush2.msra.mxu0 0.0
    %181 = vmatprep.subr.mxu0 0.0
    %182 = vmatpush2.msra.mxu0 0.0
    %183 = vmatprep.subr.mxu0 0.0
    %184 = vmatpush2.msra.mxu0 0.0
    %185 = vmatprep.subr.mxu0 0.0
    %186 = vmatpush2.msra.mxu0 0.0
    %187 = vmatprep.subr.mxu0 0.0
    %188 = vmatpush2.msra.mxu0 0.0
    %189 = vmatprep.subr.mxu0 0.0
    %190 = vmatpush2.msra.mxu0 0.0
    %191 = vmatprep.subr.mxu0 0.0
    %192 = vmatpush2.msra.mxu0 0.0
    %193 = vmatprep.subr.mxu0 0.0
    %194 = vmatpush2.msra.mxu0 0.0
    %195 = vmatprep.subr.mxu0 0.0
    %196 = vmatpush2.msra.mxu0 0.0
    %197 = vmatprep.subr.mxu0 0.0
    %198 = vmatpush2.msra.mxu0 0.0
    %199 = vmatprep.subr.mxu0 0.0
    %200 = vmatpush2.msra.mxu0 0.0
    %201 = vmatprep.mubr.f32.mxu0 0.0
    %202 = vmatmul.mubr.f32.gmra.mxu0 %v135
    %v203 = vpop.f32.mrf.mxu0
    %v204 = vadd.f32 %v132, %v203
    %v205 = vpop.f32.mrf.mxu0
    %206 = vdwg.mxu0
    %v207 = vxor.u32 %v204, 2147483648
    %v208 = vmul.f32 %v207, 1.442695
    %v209 = vpow.pop %v208
    %v210 = vadd.f32 %v209, 1.0
    %v211 = vrcp.pop %v210
    %v212 = vmul.f32 1.0, %v211
    %vm213 = vcmask 64512
    %214 = vst.msk [vmem:[#allocation5] sm:$0xff] %vm213, %v212
    // Predicated region
    $region14: #{tpu_custom_call.1} parent=1 // pred_check
      _
    $region15: #{tpu_custom_call.1} parent=1 // pred_check_branch
      %216 = sbr.rel (0) target = $region17
    $region16: #{tpu_custom_call.1} parent=1 // pred_region
      %s218 = ssub.s32 128, 128
      %219 = vsyncadd [#allocation4], %s218
      %s221 = sshll.u32 [#allocation5], 4
      %s222 = int_to_ptr.vmem [resolvable:$true] %s221
      %224 = dma.vmem_to_hbm [thread:$0]  %s222, 128, %s2, [#allocation4]
    $region17: #{tpu_custom_call.1} parent=1 // pred_fallthru
      _
    // Predicated region
    $region18: #{tpu_custom_call.1} parent=1 // pred_check
      _
    $region19: #{tpu_custom_call.1} parent=1 // pred_check_branch
      %226 = sbr.rel (0) target = $region21
    $region20: #{tpu_custom_call.1} parent=1 // pred_region
      %227 = dma.done [#allocation4], 128
    $region21: #{tpu_custom_call.1} parent=1 // pred_fallthru
      _
    %228 = vsyncpa [#allocation3], 1
    %229 = vsyncpa [#allocation4], 1

</llo_original>
